<compile_context>
chip_gen: v7x
topology: tpu7x:2x2x1
jax: 0.10.0
libtpu: 0.0.40
codegen_flags: <defaults>
</compile_context>

<pallas_src>
import math
import string

import jax
import jax.numpy as jnp
from jax.experimental import pallas as pl
from jax.experimental.pallas import tpu as pltpu

all_letters = string.ascii_lowercase + " .,;'"
n_letters = len(all_letters)      # 31
n_hidden = 128
n_output = 18                     # e.g. number of language categories

LANE = 128


def _round_up(x, m):
    return (x + m - 1) // m * m


# ---------------------------------------------------------------------------
# Kernel: one grid step == one character of the sequence.
# ---------------------------------------------------------------------------
def rnn_seq_kernel(char_idx_ref,   # SMEM (T,) int32 scalar prefetch (used by index_maps)
                   xrow_ref,       # VMEM (1, 1, W): row char_idx[t] of fused W_x (gathered)
                   wh_ref,         # VMEM (H, W): fused hidden weights, resident
                   b_ref,          # VMEM (1, W): fused bias (padded logit lanes = -1e30)
                   h0_ref,         # VMEM (1, H): initial hidden, resident
                   out_ref,        # VMEM (1, 1, Wo): per-step log-softmax (lane padded)
                   hcarry_ref):    # VMEM (1, H): resident carry == final hidden output
    del char_idx_ref  # consumed by the index_maps only
    t = pl.program_id(0)
    H = hcarry_ref.shape[1]

    # Step 0: seed the resident hidden carry from the initial hidden state.
    @pl.when(t == 0)
    def _():
        hcarry_ref[...] = h0_ref[...]

    # y = cat(x_t, h_{t-1}) @ [W_i2h^T | W_i2o^T] + [b_i2h | b_i2o]
    #   = W_x[char_t] + h_{t-1} @ W_h + b        (single fused MXU matmul)
    y = (xrow_ref[0]
         + jnp.dot(hcarry_ref[...], wh_ref[...],
                   preferred_element_type=jnp.float32)
         + b_ref[...])                                            # (1, W)

    hcarry_ref[...] = y[:, :H]                                    # new hidden h_t

    # log_softmax over the padded logits; padded lanes are -1e30 -> exp() == 0
    logits = y[:, H:]                                             # (1, Wo)
    m = jnp.max(logits, axis=1, keepdims=True)
    shifted = logits - m
    lse = jnp.log(jnp.sum(jnp.exp(shifted), axis=1, keepdims=True))
    out_ref[0] = shifted - lse


# ---------------------------------------------------------------------------
# One-time weight prep (hoisted out of the per-step path).
# ---------------------------------------------------------------------------
def prepare_fused_params(w_i2h, b_i2h, w_i2o, b_i2o):
    """Transpose to (in, out), split the one-hot/hidden halves of the input
    dimension, fuse i2h and i2o along the output axis, pad logits to 128."""
    H, fan_in = w_i2h.shape
    O = w_i2o.shape[0]
    I = fan_in - H
    Wo = _round_up(O, LANE)           # padded logit width (128)
    W = H + Wo                        # fused output width (256)

    w_fused = jnp.zeros((fan_in, W), jnp.float32)
    w_fused = w_fused.at[:, :H].set(w_i2h.T)
    w_fused = w_fused.at[:, H:H + O].set(w_i2o.T)

    wx_rows = w_fused[:I].reshape(I, 1, W)    # one row per character (gathered)
    wh = w_fused[I:]                          # (H, W)

    b = jnp.zeros((1, W), jnp.float32)
    b = b.at[0, :H].set(b_i2h)
    b = b.at[0, H:H + O].set(b_i2o)
    b = b.at[0, H + O:].set(-1e30)            # kill padded logit lanes in softmax
    return wx_rows, wh, b


def rnn_sequence_forward(char_idx, h0, wx_rows, wh, b, n_out):
    """Whole-sequence recurrence in one pallas_call.

    char_idx: (T,) int32 character indices (one-hot inputs in disguise)
    h0:       (1, H) initial hidden state
    Returns:  (per-step log-softmax (T, 1, n_out), final hidden (1, H)).
    """
    T = char_idx.shape[0]
    _, _, W = wx_rows.shape
    H = wh.shape[0]
    Wo = W - H

    out_pad, h_final = pl.pallas_call(
        rnn_seq_kernel,
        out_shape=(jax.ShapeDtypeStruct((T, 1, Wo), jnp.float32),
                   jax.ShapeDtypeStruct((1, H), jnp.float32)),
        grid_spec=pltpu.PrefetchScalarGridSpec(
            num_scalar_prefetch=1,
            grid=(T,),
            in_specs=[
                # data-dependent row gather of the fused input-weight rows
                pl.BlockSpec((1, 1, W), lambda t, idx: (idx[t], 0, 0)),
                # weights / bias / h0 stay resident in VMEM across all steps
                pl.BlockSpec((H, W), lambda t, idx: (0, 0)),
                pl.BlockSpec((1, W), lambda t, idx: (0, 0)),
                pl.BlockSpec((1, H), lambda t, idx: (0, 0)),
            ],
            out_specs=(
                pl.BlockSpec((1, 1, Wo), lambda t, idx: (t, 0, 0)),
                pl.BlockSpec((1, H), lambda t, idx: (0, 0)),  # resident hidden carry
            ),
        ),
        compiler_params=pltpu.CompilerParams(
            dimension_semantics=("arbitrary",)),   # true time recurrence
    )(char_idx, wx_rows, wh, b, h0)

    return out_pad[:, :, :n_out], h_final


def line_to_indices(line):
    """JAX analogue of the PyTorch lineToTensor helper (indices, not one-hots)."""
    return jnp.array([all_letters.find(c) for c in line], dtype=jnp.int32)


if __name__ == "__main__":
    key = jax.random.PRNGKey(0)
    k1, k2, k3, k4 = jax.random.split(key, 4)

    input_size = n_letters                  # 31
    hidden_size = n_hidden                  # 128
    output_size = n_output                  # 18
    fan_in = input_size + hidden_size       # 159
    bound = 1.0 / math.sqrt(fan_in)

    # Deterministic nn.Linear-style init: U(-1/sqrt(fan_in), 1/sqrt(fan_in))
    w_i2h = jax.random.uniform(k1, (hidden_size, fan_in), jnp.float32, -bound, bound)
    b_i2h = jax.random.uniform(k2, (hidden_size,), jnp.float32, -bound, bound)
    w_i2o = jax.random.uniform(k3, (output_size, fan_in), jnp.float32, -bound, bound)
    b_i2o = jax.random.uniform(k4, (output_size,), jnp.float32, -bound, bound)

    # One-time fused-weight prep.
    wx_rows, wh, b = prepare_fused_params(w_i2h, b_i2h, w_i2o, b_i2o)

    # Example input: the name "albert" (lowercase; all_letters is lowercase),
    # zero initial hidden — same per-character semantics as the PyTorch loop.
    name = "albert"
    char_idx = line_to_indices(name)
    h0 = jnp.zeros((1, hidden_size), jnp.float32)

    outs, h_final = rnn_sequence_forward(char_idx, h0, wx_rows, wh, b, output_size)
    jax.block_until_ready((outs, h_final))

    # Pure-JAX reference: unrolled per-step loop with the original weights.
    h = h0
    ref_outs = []
    for c in name:
        x = jnp.zeros((1, input_size), jnp.float32).at[0, all_letters.find(c)].set(1.0)
        combined = jnp.concatenate([x, h], axis=1)
        new_h = combined @ w_i2h.T + b_i2h
        logits = combined @ w_i2o.T + b_i2o
        ref_outs.append(jax.nn.log_softmax(logits, axis=1))
        h = new_h
    ref_outs = jnp.stack(ref_outs, axis=0)              # (T, 1, O)

    assert outs.shape == (len(name), 1, output_size)
    assert h_final.shape == (1, hidden_size)
    assert jnp.allclose(outs, ref_outs, atol=1e-4), "output mismatch"
    assert jnp.allclose(h_final, h, atol=1e-4), "hidden mismatch"

    # TODO(synk): for throughput workloads, add a batch (M) dimension of >=8
    # independent sequences and mark it "parallel" to fill MXU rows / both
    # v7x TensorCores; kept batch=1 here to match the module's (1, *) forward.

    print("KERNEL_OK")
</pallas_src>

<mosaic_0001>
module attributes {stable_mosaic.version = 11 : i64} {
  func.func @rnn_seq_kernel(%arg0: i32, %arg1: memref<6xi32, #tpu.memory_space<smem>>, %arg2: memref<1x1x256xf32, #tpu.memory_space<vmem>>, %arg3: memref<128x256xf32, #tpu.memory_space<vmem>>, %arg4: memref<1x256xf32, #tpu.memory_space<vmem>>, %arg5: memref<1x128xf32, #tpu.memory_space<vmem>>, %arg6: memref<1x1x128xf32, #tpu.memory_space<vmem>>, %arg7: memref<1x128xf32, #tpu.memory_space<vmem>>) attributes {dimension_semantics = [#tpu.dimension_semantics<arbitrary>], iteration_bounds = array<i64: 6>, scalar_prefetch = 1 : i64, scratch_operands = 0 : i64, tpu.core_type = #tpu.core_type<tc>, window_params = [{transform_indices = @transform_0, window_bounds = array<i64: 1, 1, 256>}, {pipeline_mode = #tpu.pipeline_mode<synchronous>, transform_indices = @transform_1, window_bounds = array<i64: 128, 256>}, {pipeline_mode = #tpu.pipeline_mode<synchronous>, transform_indices = @transform_2, window_bounds = array<i64: 1, 256>}, {pipeline_mode = #tpu.pipeline_mode<synchronous>, transform_indices = @transform_3, window_bounds = array<i64: 1, 128>}, {transform_indices = @transform_4, window_bounds = array<i64: 1, 1, 128>}, {pipeline_mode = #tpu.pipeline_mode<synchronous>, transform_indices = @transform_5, window_bounds = array<i64: 1, 128>}]} {
    %c0_i32 = arith.constant 0 : i32
    %0 = arith.cmpi eq, %arg0, %c0_i32 : i32
    %1 = arith.extui %0 : i1 to i32
    %c0_i32_0 = arith.constant 0 : i32
    %2 = arith.cmpi ne, %1, %c0_i32_0 : i32
    scf.if %2 {
      %c0_16 = arith.constant 0 : index
      %c0_17 = arith.constant 0 : index
      %27 = vector.load %arg5[%c0_16, %c0_17] : memref<1x128xf32, #tpu.memory_space<vmem>>, vector<1x128xf32>
      %c0_18 = arith.constant 0 : index
      %c0_19 = arith.constant 0 : index
      %28 = vector.load %arg7[%c0_18, %c0_19] : memref<1x128xf32, #tpu.memory_space<vmem>>, vector<1x128xf32>
      tpu.vector_store %arg7[%c0_18, %c0_19], %27 {strides = array<i32>} : memref<1x128xf32, #tpu.memory_space<vmem>>, vector<1x128xf32>,
    } else {
    }
    %c0 = arith.constant 0 : index
    %c0_1 = arith.constant 0 : index
    %c0_2 = arith.constant 0 : index
    %3 = vector.load %arg2[%c0, %c0_1, %c0_2] : memref<1x1x256xf32, #tpu.memory_space<vmem>>, vector<1x1x256xf32>
    %4 = vector.shape_cast %3 : vector<1x1x256xf32> to vector<1x256xf32>
    %c0_3 = arith.constant 0 : index
    %c0_4 = arith.constant 0 : index
    %5 = vector.load %arg7[%c0_3, %c0_4] : memref<1x128xf32, #tpu.memory_space<vmem>>, vector<1x128xf32>
    %c0_5 = arith.constant 0 : index
    %c0_6 = arith.constant 0 : index
    %6 = vector.load %arg3[%c0_5, %c0_6] : memref<128x256xf32, #tpu.memory_space<vmem>>, vector<128x256xf32>
    %cst = arith.constant dense<0.000000e+00> : vector<1x256xf32>
    %7 = tpu.matmul %5, %6, %cst {dimension_numbers = #tpu.dot_dimension_numbers<[1], [0], [0], [1], [0, 0, 1, 1], [], []>} : vector<1x128xf32>, vector<128x256xf32>, vector<1x256xf32> -> vector<1x256xf32>
    %8 = arith.addf %4, %7 : vector<1x256xf32>
    %c0_7 = arith.constant 0 : index
    %c0_8 = arith.constant 0 : index
    %9 = vector.load %arg4[%c0_7, %c0_8] : memref<1x256xf32, #tpu.memory_space<vmem>>, vector<1x256xf32>
    %10 = arith.addf %8, %9 : vector<1x256xf32>
    %11 = vector.extract_strided_slice %10 {offsets = [0, 0], sizes = [1, 128], strides = [1, 1]} : vector<1x256xf32> to vector<1x128xf32>
    %c0_9 = arith.constant 0 : index
    %c0_10 = arith.constant 0 : index
    %12 = vector.load %arg7[%c0_9, %c0_10] : memref<1x128xf32, #tpu.memory_space<vmem>>, vector<1x128xf32>
    tpu.vector_store %arg7[%c0_9, %c0_10], %11 {strides = array<i32>} : memref<1x128xf32, #tpu.memory_space<vmem>>, vector<1x128xf32>,
    %13 = vector.extract_strided_slice %10 {offsets = [0, 128], sizes = [1, 128], strides = [1, 1]} : vector<1x256xf32> to vector<1x128xf32>
    %cst_11 = arith.constant dense<0xFF800000> : vector<1xf32>
    %14 = vector.multi_reduction <maximumf>, %13, %cst_11 [1] : vector<1x128xf32> to vector<1xf32>
    %15 = vector.shape_cast %14 : vector<1xf32> to vector<1x1xf32>
    %16 = vector.broadcast %15 : vector<1x1xf32> to vector<1x128xf32>
    %17 = arith.subf %13, %16 : vector<1x128xf32>
    %18 = math.exp %17 : vector<1x128xf32>
    %cst_12 = arith.constant dense<0.000000e+00> : vector<1xf32>
    %19 = vector.multi_reduction <add>, %18, %cst_12 [1] : vector<1x128xf32> to vector<1xf32>
    %20 = vector.shape_cast %19 : vector<1xf32> to vector<1x1xf32>
    %21 = math.log %20 : vector<1x1xf32>
    %22 = vector.broadcast %21 : vector<1x1xf32> to vector<1x128xf32>
    %23 = arith.subf %17, %22 : vector<1x128xf32>
    %c0_13 = arith.constant 0 : index
    %c0_14 = arith.constant 0 : index
    %c0_15 = arith.constant 0 : index
    %24 = vector.load %arg6[%c0_13, %c0_14, %c0_15] : memref<1x1x128xf32, #tpu.memory_space<vmem>>, vector<1x1x128xf32>
    %25 = vector.shape_cast %24 : vector<1x1x128xf32> to vector<1x128xf32>
    %26 = vector.shape_cast %23 : vector<1x128xf32> to vector<1x1x128xf32>
    tpu.vector_store %arg6[%c0_13, %c0_14, %c0_15], %26 {strides = array<i32>} : memref<1x1x128xf32, #tpu.memory_space<vmem>>, vector<1x1x128xf32>,
    return
  }
  func.func @transform_0(%arg0: i32, %arg1: memref<6xi32, #tpu.memory_space<smem>>) -> (i32, i32, i32) {
    %0 = arith.index_cast %arg0 : i32 to index
    %1 = memref.load %arg1[%0] : memref<6xi32, #tpu.memory_space<smem>>
    %c0_i32 = arith.constant 0 : i32
    %c0_i32_0 = arith.constant 0 : i32
    %c0_i32_1 = arith.constant 0 : i32
    return %1, %c0_i32, %c0_i32_0 : i32, i32, i32
  }
  func.func @transform_1(%arg0: i32, %arg1: memref<6xi32, #tpu.memory_space<smem>>) -> (i32, i32) {
    %c0_i32 = arith.constant 0 : i32
    %c0_i32_0 = arith.constant 0 : i32
    %c0_i32_1 = arith.constant 0 : i32
    return %c0_i32, %c0_i32_0 : i32, i32
  }
  func.func @transform_2(%arg0: i32, %arg1: memref<6xi32, #tpu.memory_space<smem>>) -> (i32, i32) {
    %c0_i32 = arith.constant 0 : i32
    %c0_i32_0 = arith.constant 0 : i32
    %c0_i32_1 = arith.constant 0 : i32
    return %c0_i32, %c0_i32_0 : i32, i32
  }
  func.func @transform_3(%arg0: i32, %arg1: memref<6xi32, #tpu.memory_space<smem>>) -> (i32, i32) {
    %c0_i32 = arith.constant 0 : i32
    %c0_i32_0 = arith.constant 0 : i32
    %c0_i32_1 = arith.constant 0 : i32
    return %c0_i32, %c0_i32_0 : i32, i32
  }
  func.func @transform_4(%arg0: i32, %arg1: memref<6xi32, #tpu.memory_space<smem>>) -> (i32, i32, i32) {
    %c0_i32 = arith.constant 0 : i32
    %c0_i32_0 = arith.constant 0 : i32
    %c0_i32_1 = arith.constant 0 : i32
    return %arg0, %c0_i32, %c0_i32_0 : i32, i32, i32
  }
  func.func @transform_5(%arg0: i32, %arg1: memref<6xi32, #tpu.memory_space<smem>>) -> (i32, i32) {
    %c0_i32 = arith.constant 0 : i32
    %c0_i32_0 = arith.constant 0 : i32
    %c0_i32_1 = arith.constant 0 : i32
    return %c0_i32, %c0_i32_0 : i32, i32
  }
}

</mosaic_0001>

<llo_original>
// kernel: tpu_custom_call.1
$region0: #{tpu_custom_call.1}
  #allocation0 [shape = 'u32[]', space=smem, size = 0x4, offset = 0x4, fixed_abs, tag = 'smem constant byte address 0x4 - core index']
  #allocation1 [shape = 'u32[144,128]{1,0:T(1,128)}', space=vmem, size = 0x12000, scoped, tag = 'internal scratch']
  #allocation2 [shape = 's32[1]{0}', space=sflag, size = 0x4, scoped, tag = 'scoped memory for tpu_custom_call.1']
  #allocation3 [shape = 'u8[512]{0}', space=smem, size = 0x200, scoped, tag = 'prefetched SMEM operand 0']
  %s0 = inlined_call_operand.hbm [shape: s32[6], index: 0, kind: input, shape index: {}]
  %s1 = inlined_call_operand.hbm [shape: f32[31,1,256], index: 1, kind: input, shape index: {}]
  %s2 = inlined_call_operand.hbm [shape: f32[128,256], index: 2, kind: input, shape index: {}]
  %s3 = inlined_call_operand.vmem [shape: f32[1,256], index: 3, kind: input, shape index: {}]
  %s4 = inlined_call_operand.vmem [shape: f32[1,128], index: 4, kind: input, shape index: {}]
  %s5 = inlined_call_operand.hbm [shape: f32[6,1,128], index: 5, kind: output, shape index: {0}]
  %s6 = inlined_call_operand.hbm [shape: f32[1,128], index: 6, kind: output, shape index: {1}]
  %7 = xla_tuple %s5, %s6
  %s8 = sld [smem:[#allocation0]]
  $region69: #{tpu_custom_call.1} parent=0
    _
  %s10 = ssub.s32 1, %s8
  %s11 = scalar_select 0, %s10, %s8
  %13 = dma.hbm_to_smem %s0, 16, [#allocation3], [#allocation2]
  %14 = dma.done [#allocation2], 16
  %15 = sfence
  $region1: #{tpu_custom_call.1} parent=0
    #allocation4 [shape = 'u8[2048]{0}', space=vmem, size = 0x800, scoped, tag = 'input window, operand 1']
    #allocation5 [shape = 's32[2]{0}', space=sflag, size = 0x8, scoped, tag = 'scoped memory for tpu_custom_call.1']
    #allocation6 [shape = 's32[2]{0}', space=sflag, size = 0x8, scoped, tag = 'scoped memory for tpu_custom_call.1']
    #allocation7 [shape = 'u8[131072]{0}', space=vmem, size = 0x20000, scoped, tag = 'input window, operand 2, single buffered']
    #allocation8 [shape = 's32[1]{0}', space=sflag, size = 0x4, scoped, tag = 'scoped memory for tpu_custom_call.1']
    #allocation9 [shape = 'u8[1024]{0}', space=vmem, size = 0x400, scoped, tag = 'output window, operand 0']
    #allocation10 [shape = 'u8[512]{0}', space=vmem, size = 0x400, scoped, tag = 'output window, operand 1, single buffered']
    #allocation11 [shape = 's32[1]{0}', space=sflag, size = 0x4, scoped, tag = 'scoped memory for tpu_custom_call.1']
    %16 = vsyncpa [#allocation5], 0
    %s17 = scalar_lea.sflag [#allocation5], 1
    %18 = vsyncpa %s17, 0
    %19 = vsyncpa [#allocation8], 0
    %20 = vsyncpa [#allocation6], 0
    %s21 = scalar_lea.sflag [#allocation6], 1
    %22 = vsyncpa %s21, 0
    %23 = vsyncpa [#allocation11], 0
    loop: start=0, step=1, limit=8
    $region2: #{tpu_custom_call.1} parent=1 // loop_pre_header
      _
    $region3: #{tpu_custom_call.1} parent=1 // loop_header
      %s25 = sphi 0, %s29
      %p26 = scmp.ge.s32.totalorder %s25, 8
      %s37 = sphi 0, %s39
      %s40 = sphi 0, %s37
      %s41 = sphi 0, %s40
      %s57 = sphi 0, %s41
      %s61 = sphi 0, %s61
      %s63 = sphi 0, %s61
      %s64 = sphi 0, %s63
      %s78 = sphi 0, %s64
      %s82 = sphi 0, %s82
      %s84 = sphi 0, %s82
      %s85 = sphi 0, %s84
      %s99 = sphi 0, %s85
      %s103 = sphi 0, %s103
      %s105 = sphi 0, %s103
      %s106 = sphi 0, %s105
      %s120 = sphi 0, %s106
      %s126 = sphi 0, %s128
      %s129 = sphi 0, %s126
      %s130 = sphi 0, %s129
      %s146 = sphi 0, %s130
      %s150 = sphi 0, %s150
      %s152 = sphi 0, %s150
      %s153 = sphi 0, %s152
      %s167 = sphi 0, %s153
    $region4: #{tpu_custom_call.1} parent=1 // loop_header_branch
      %28 = sbr.rel (%p26) target = $region8
    $region5: #{tpu_custom_call.1} parent=1 // loop_body
      %s30 = ssub.s32 %s25, 1
      %s31 = ssub.s32 %s25, 2
      %s32 = sadd.s32 %s25, 1
      %s33 = sld [smem:[#allocation3 + %s25]]
      %s34 = sld [smem:[#allocation3 + %s32]]
      %s35 = ssub.s32 %s33, %s34
      %p36 = scmp.eq.s32.totalorder %s35, 0
      %s38 = sadd.s32 %s37, 1
      %s39 = scalar_select %p36, %s37, %s38
      %p42 = pneg %p36
      %p43 = scmp.eq.s32.totalorder %s25, 5
      %p44 = por %p42, %p43
      %p45 = scmp.ne.s32.totalorder %s37, %s40
      %p46 = scmp.eq.s32.totalorder %s25, 0
      %p47 = por %p45, %p46
      %p48 = scmp.ne.s32.totalorder %s37, %s40
      %p49 = scmp.eq.s32.totalorder %s30, 5
      %p50 = por %p48, %p49
      %p51 = scmp.ne.s32.totalorder %s40, %s41
      %p52 = scmp.eq.s32.totalorder %s30, 0
      %p53 = por %p51, %p52
      %p54 = scmp.ne.s32.totalorder %s40, %s41
      %p55 = scmp.eq.s32.totalorder %s31, 5
      %p56 = por %p54, %p55
      %p58 = scmp.ne.s32.totalorder %s41, %s57
      %p59 = scmp.eq.s32.totalorder %s31, 0
      %p60 = por %p58, %p59
      %s62 = sadd.s32 %s61, 1
      %p65 = scmp.eq.s32.totalorder %s25, 5
      %p66 = scmp.ne.s32.totalorder %s61, %s63
      %p67 = scmp.eq.s32.totalorder %s25, 0
      %p68 = por %p66, %p67
      %p69 = scmp.ne.s32.totalorder %s61, %s63
      %p70 = scmp.eq.s32.totalorder %s30, 5
      %p71 = por %p69, %p70
      %p72 = scmp.ne.s32.totalorder %s63, %s64
      %p73 = scmp.eq.s32.totalorder %s30, 0
      %p74 = por %p72, %p73
      %p75 = scmp.ne.s32.totalorder %s63, %s64
      %p76 = scmp.eq.s32.totalorder %s31, 5
      %p77 = por %p75, %p76
      %p79 = scmp.ne.s32.totalorder %s64, %s78
      %p80 = scmp.eq.s32.totalorder %s31, 0
      %p81 = por %p79, %p80
      %s83 = sadd.s32 %s82, 1
      %p86 = scmp.eq.s32.totalorder %s25, 5
      %p87 = scmp.ne.s32.totalorder %s82, %s84
      %p88 = scmp.eq.s32.totalorder %s25, 0
      %p89 = por %p87, %p88
      %p90 = scmp.ne.s32.totalorder %s82, %s84
      %p91 = scmp.eq.s32.totalorder %s30, 5
      %p92 = por %p90, %p91
      %p93 = scmp.ne.s32.totalorder %s84, %s85
      %p94 = scmp.eq.s32.totalorder %s30, 0
      %p95 = por %p93, %p94
      %p96 = scmp.ne.s32.totalorder %s84, %s85
      %p97 = scmp.eq.s32.totalorder %s31, 5
      %p98 = por %p96, %p97
      %p100 = scmp.ne.s32.totalorder %s85, %s99
      %p101 = scmp.eq.s32.totalorder %s31, 0
      %p102 = por %p100, %p101
      %s104 = sadd.s32 %s103, 1
      %p107 = scmp.eq.s32.totalorder %s25, 5
      %p108 = scmp.ne.s32.totalorder %s103, %s105
      %p109 = scmp.eq.s32.totalorder %s25, 0
      %p110 = por %p108, %p109
      %p111 = scmp.ne.s32.totalorder %s103, %s105
      %p112 = scmp.eq.s32.totalorder %s30, 5
      %p113 = por %p111, %p112
      %p114 = scmp.ne.s32.totalorder %s105, %s106
      %p115 = scmp.eq.s32.totalorder %s30, 0
      %p116 = por %p114, %p115
      %p117 = scmp.ne.s32.totalorder %s105, %s106
      %p118 = scmp.eq.s32.totalorder %s31, 5
      %p119 = por %p117, %p118
      %p121 = scmp.ne.s32.totalorder %s106, %s120
      %p122 = scmp.eq.s32.totalorder %s31, 0
      %p123 = por %p121, %p122
      %s124 = ssub.s32 %s25, %s32
      %p125 = scmp.eq.s32.totalorder %s124, 0
      %s127 = sadd.s32 %s126, 1
      %s128 = scalar_select %p125, %s126, %s127
      %p131 = pneg %p125
      %p132 = scmp.eq.s32.totalorder %s25, 5
      %p133 = por %p131, %p132
      %p134 = scmp.ne.s32.totalorder %s126, %s129
      %p135 = scmp.eq.s32.totalorder %s25, 0
      %p136 = por %p134, %p135
      %p137 = scmp.ne.s32.totalorder %s126, %s129
      %p138 = scmp.eq.s32.totalorder %s30, 5
      %p139 = por %p137, %p138
      %p140 = scmp.ne.s32.totalorder %s129, %s130
      %p141 = scmp.eq.s32.totalorder %s30, 0
      %p142 = por %p140, %p141
      %p143 = scmp.ne.s32.totalorder %s129, %s130
      %p144 = scmp.eq.s32.totalorder %s31, 5
      %p145 = por %p143, %p144
      %p147 = scmp.ne.s32.totalorder %s130, %s146
      %p148 = scmp.eq.s32.totalorder %s31, 0
      %p149 = por %p147, %p148
      %s151 = sadd.s32 %s150, 1
      %p154 = scmp.eq.s32.totalorder %s25, 5
      %p155 = scmp.ne.s32.totalorder %s150, %s152
      %p156 = scmp.eq.s32.totalorder %s25, 0
      %p157 = por %p155, %p156
      %p158 = scmp.ne.s32.totalorder %s150, %s152
      %p159 = scmp.eq.s32.totalorder %s30, 5
      %p160 = por %p158, %p159
      %p161 = scmp.ne.s32.totalorder %s152, %s153
      %p162 = scmp.eq.s32.totalorder %s30, 0
      %p163 = por %p161, %p162
      %p164 = scmp.ne.s32.totalorder %s152, %s153
      %p165 = scmp.eq.s32.totalorder %s31, 5
      %p166 = por %p164, %p165
      %p168 = scmp.ne.s32.totalorder %s153, %s167
      %p169 = scmp.eq.s32.totalorder %s31, 0
      %p170 = por %p168, %p169
      %p171 = scmp.le.s32.totalorder 1, %s25
      %p172 = scmp.lt.s32.totalorder %s25, 7
      %p173 = pnand %p171, %p172
      %p174 = pneg %p173
      // Predicated region
      $region9: #{tpu_custom_call.1} parent=5 // pred_check
        _
      $region10: #{tpu_custom_call.1} parent=5 // pred_check_branch
        %176 = sbr.rel (%p173) target = $region12
      $region11: #{tpu_custom_call.1} parent=5 // pred_region
        %s177 = ssub.s32 %s25, 1
        // Predicated region
        $region13: #{tpu_custom_call.1} parent=11 // pred_check
          %p178 = pneg %p74
        $region14: #{tpu_custom_call.1} parent=11 // pred_check_branch
          %180 = sbr.rel (%p178) target = $region16
        $region15: #{tpu_custom_call.1} parent=11 // pred_region
          %s182 = ssub.s32 4096, 4096
          %183 = vsyncadd [#allocation8], %s182
          %s184 = sshll.u32 [#allocation7], 4
          %s185 = int_to_ptr.vmem [resolvable:$true] %s184
          %190 = dma.hbm_to_vmem [thread:$0]  %s2, 4096, %s185, [#allocation8], 256, 256, 16
        $region16: #{tpu_custom_call.1} parent=11 // pred_fallthru
          _
        // Predicated region
        $region17: #{tpu_custom_call.1} parent=11 // pred_check
          %p191 = pneg %p95
        $region18: #{tpu_custom_call.1} parent=11 // pred_check_branch
          %193 = sbr.rel (%p191) target = $region20
        $region19: #{tpu_custom_call.1} parent=11 // pred_region
          _
        $region20: #{tpu_custom_call.1} parent=11 // pred_fallthru
          _
        // Predicated region
        $region21: #{tpu_custom_call.1} parent=11 // pred_check
          %p194 = pneg %p116
        $region22: #{tpu_custom_call.1} parent=11 // pred_check_branch
          %196 = sbr.rel (%p194) target = $region24
        $region23: #{tpu_custom_call.1} parent=11 // pred_region
          _
        $region24: #{tpu_custom_call.1} parent=11 // pred_fallthru
          _
      $region12: #{tpu_custom_call.1} parent=5 // pred_fallthru
        _
      %p197 = scmp.lt.s32.totalorder %s25, 6
      // Predicated region
      $region25: #{tpu_custom_call.1} parent=5 // pred_check
        %p198 = pneg %p197
      $region26: #{tpu_custom_call.1} parent=5 // pred_check_branch
        %200 = sbr.rel (%p198) target = $region28
      $region27: #{tpu_custom_call.1} parent=5 // pred_region
        // Predicated region
        $region29: #{tpu_custom_call.1} parent=27 // pred_check
          %p201 = pneg %p47
        $region30: #{tpu_custom_call.1} parent=27 // pred_check_branch
          %203 = sbr.rel (%p201) target = $region32
        $region31: #{tpu_custom_call.1} parent=27 // pred_region
          %s204 = sand.u32 %s37, 1
          %s205 = scalar_lea.sflag [#allocation5], %s204
          %s206 = sand.u32 %s37, 1
          %s207 = smul.addr %s206, 2
          %s208 = scalar_lea.vmem [#allocation4], %s207
          %s209 = sld [smem:[#allocation3 + %s25]]
          %s211 = ssub.s32 32, 32
          %212 = vsyncadd %s205, %s211
          %s213 = smul.addr %s209, 2
          %s214 = smul.addr %s213, 16
          %s215 = scalar_lea.hbm %s1, %s214
          %s217 = sshll.u32 %s208, 4
          %s218 = int_to_ptr.vmem [resolvable:$true] %s217
          %220 = dma.hbm_to_vmem [thread:$0]  %s215, 32, %s218, %s205
        $region32: #{tpu_custom_call.1} parent=27 // pred_fallthru
          _
      $region28: #{tpu_custom_call.1} parent=5 // pred_fallthru
        _
      %p221 = scmp.le.s32.totalorder 1, %s25
      %p222 = scmp.lt.s32.totalorder %s25, 7
      %p223 = pnand %p221, %p222
      %p224 = pneg %p223
      // Predicated region
      $region33: #{tpu_custom_call.1} parent=5 // pred_check
        _
      $region34: #{tpu_custom_call.1} parent=5 // pred_check_branch
        %226 = sbr.rel (%p223) target = $region36
      $region35: #{tpu_custom_call.1} parent=5 // pred_region
        %s227 = ssub.s32 %s25, 1
        %s228 = sand.u32 %s40, 1
        %s229 = scalar_lea.sflag [#allocation5], %s228
        %s230 = sand.u32 %s40, 1
        %s231 = smul.addr %s230, 2
        %s232 = scalar_lea.vmem [#allocation4], %s231
        // Predicated region
        $region37: #{tpu_custom_call.1} parent=35 // pred_check
          %p233 = pneg %p53
        $region38: #{tpu_custom_call.1} parent=35 // pred_check_branch
          %235 = sbr.rel (%p233) target = $region40
        $region39: #{tpu_custom_call.1} parent=35 // pred_region
          %236 = dma.done %s229, 32
        $region40: #{tpu_custom_call.1} parent=35 // pred_fallthru
          _
        // Predicated region
        $region41: #{tpu_custom_call.1} parent=35 // pred_check
          %p237 = pneg %p74
        $region42: #{tpu_custom_call.1} parent=35 // pred_check_branch
          %239 = sbr.rel (%p237) target = $region44
        $region43: #{tpu_custom_call.1} parent=35 // pred_region
          %240 = dma.done [#allocation8], 4096
        $region44: #{tpu_custom_call.1} parent=35 // pred_fallthru
          _
        %s241 = sand.u32 %s40, 1
        %s242 = scalar_lea.sflag [#allocation5], %s241
        %s243 = sand.u32 %s40, 1
        %s244 = smul.addr %s243, 2
        %s245 = scalar_lea.vmem [#allocation4], %s244
        %p246 = pneg %p53
        %p247 = pneg %p50
        %p248 = pneg %p74
        %p249 = pneg %p71
        %p250 = pneg %p95
        %p251 = pneg %p92
        %p252 = pneg %p116
        %p253 = pneg %p113
        %p254 = pneg %p142
        %p255 = pneg %p139
        %s256 = sand.u32 %s129, 1
        %s257 = scalar_lea.sflag [#allocation6], %s256
        %s258 = sand.u32 %s129, 1
        %s259 = scalar_lea.vmem [#allocation9], %s258
        %p260 = pneg %p163
        %p261 = pneg %p160
        %s262 = sld [smem:[#allocation3 + %s30]]
        %p263 = scmp.eq.s32.totalorder %s30, 0
        // Predicated region
        $region45: #{tpu_custom_call.1} parent=35 // pred_check
          %p264 = pneg %p263
        $region46: #{tpu_custom_call.1} parent=35 // pred_check_branch
          %266 = sbr.rel (%p264) target = $region48
        $region47: #{tpu_custom_call.1} parent=35 // pred_region
          %v267 = vld [vmem:[%s4] sm:$0x1]
          %268 = vst [vmem:[#allocation10] sm:$0x1] %v267
        $region48: #{tpu_custom_call.1} parent=35 // pred_fallthru
          _
        %v269 = vld [vmem:[%s232] sm:$0x3]
        %v270 = vld [vmem:[#allocation10] sm:$0x1]
        %v271 = vld [vmem:[#allocation7] sm:$0xff]
        %v272 = vld [vmem:[#allocation7 + $0x8] sm:$0xff]
        %v273 = vld [vmem:[#allocation7 + $0x10] sm:$0xff]
        %v274 = vld [vmem:[#allocation7 + $0x18] sm:$0xff]
        %v275 = vld [vmem:[#allocation7 + $0x20] sm:$0xff]
        %v276 = vld [vmem:[#allocation7 + $0x28] sm:$0xff]
        %v277 = vld [vmem:[#allocation7 + $0x30] sm:$0xff]
        %v278 = vld [vmem:[#allocation7 + $0x38] sm:$0xff]
        %v279 = vld [vmem:[#allocation7 + $0x40] sm:$0xff]
        %v280 = vld [vmem:[#allocation7 + $0x48] sm:$0xff]
        %v281 = vld [vmem:[#allocation7 + $0x50] sm:$0xff]
        %v282 = vld [vmem:[#allocation7 + $0x58] sm:$0xff]
        %v283 = vld [vmem:[#allocation7 + $0x60] sm:$0xff]
        %v284 = vld [vmem:[#allocation7 + $0x68] sm:$0xff]
        %v285 = vld [vmem:[#allocation7 + $0x70] sm:$0xff]
        %v286 = vld [vmem:[#allocation7 + $0x78] sm:$0xff]
        %v287 = vld [vmem:[#allocation7 + $0x80] sm:$0xff]
        %v288 = vld [vmem:[#allocation7 + $0x88] sm:$0xff]
        %v289 = vld [vmem:[#allocation7 + $0x90] sm:$0xff]
        %v290 = vld [vmem:[#allocation7 + $0x98] sm:$0xff]
        %v291 = vld [vmem:[#allocation7 + $0xa0] sm:$0xff]
        %v292 = vld [vmem:[#allocation7 + $0xa8] sm:$0xff]
        %v293 = vld [vmem:[#allocation7 + $0xb0] sm:$0xff]
        %v294 = vld [vmem:[#allocation7 + $0xb8] sm:$0xff]
        %v295 = vld [vmem:[#allocation7 + $0xc0] sm:$0xff]
        %v296 = vld [vmem:[#allocation7 + $0xc8] sm:$0xff]
        %v297 = vld [vmem:[#allocation7 + $0xd0] sm:$0xff]
        %v298 = vld [vmem:[#allocation7 + $0xd8] sm:$0xff]
        %v299 = vld [vmem:[#allocation7 + $0xe0] sm:$0xff]
        %v300 = vld [vmem:[#allocation7 + $0xe8] sm:$0xff]
        %v301 = vld [vmem:[#allocation7 + $0xf0] sm:$0xff]
        %v302 = vld [vmem:[#allocation7 + $0xf8] sm:$0xff]
        %303 = vmatprep.subr.mxu0 %v272
        %304 = vmatpush1.msra.mxu0 %v271
        %305 = vmatprep.subr.mxu0 %v274
        %306 = vmatpush1.msra.mxu0 %v273
        %307 = vmatprep.subr.mxu0 %v276
        %308 = vmatpush1.msra.mxu0 %v275
        %309 = vmatprep.subr.mxu0 %v278
        %310 = vmatpush1.msra.mxu0 %v277
        %311 = vmatprep.subr.mxu0 %v280
        %312 = vmatpush1.msra.mxu0 %v279
        %313 = vmatprep.subr.mxu0 %v282
        %314 = vmatpush1.msra.mxu0 %v281
        %315 = vmatprep.subr.mxu0 %v284
        %316 = vmatpush1.msra.mxu0 %v283
        %317 = vmatprep.subr.mxu0 %v286
        %318 = vmatpush1.msra.mxu0 %v285
        %319 = vmatprep.subr.mxu0 %v288
        %320 = vmatpush1.msra.mxu0 %v287
        %321 = vmatprep.subr.mxu0 %v290
        %322 = vmatpush1.msra.mxu0 %v289
        %323 = vmatprep.subr.mxu0 %v292
        %324 = vmatpush1.msra.mxu0 %v291
        %325 = vmatprep.subr.mxu0 %v294
        %326 = vmatpush1.msra.mxu0 %v293
        %327 = vmatprep.subr.mxu0 %v296
        %328 = vmatpush1.msra.mxu0 %v295
        %329 = vmatprep.subr.mxu0 %v298
        %330 = vmatpush1.msra.mxu0 %v297
        %331 = vmatprep.subr.mxu0 %v300
        %332 = vmatpush1.msra.mxu0 %v299
        %333 = vmatprep.subr.mxu0 %v302
        %334 = vmatpush1.msra.mxu0 %v301
        %335 = vmatprep.subr.mxu0 0.0
        %336 = vmatpush1.msra.mxu0 0.0
        %337 = vmatprep.subr.mxu0 0.0
        %338 = vmatpush1.msra.mxu0 0.0
        %339 = vmatprep.subr.mxu0 0.0
        %340 = vmatpush1.msra.mxu0 0.0
        %341 = vmatprep.subr.mxu0 0.0
        %342 = vmatpush1.msra.mxu0 0.0
        %343 = vmatprep.subr.mxu0 0.0
        %344 = vmatpush1.msra.mxu0 0.0
        %345 = vmatprep.subr.mxu0 0.0
        %346 = vmatpush1.msra.mxu0 0.0
        %347 = vmatprep.subr.mxu0 0.0
        %348 = vmatpush1.msra.mxu0 0.0
        %349 = vmatprep.subr.mxu0 0.0
        %350 = vmatpush1.msra.mxu0 0.0
        %351 = vmatprep.subr.mxu0 0.0
        %352 = vmatpush1.msra.mxu0 0.0
        %353 = vmatprep.subr.mxu0 0.0
        %354 = vmatpush1.msra.mxu0 0.0
        %355 = vmatprep.subr.mxu0 0.0
        %356 = vmatpush1.msra.mxu0 0.0
        %357 = vmatprep.subr.mxu0 0.0
        %358 = vmatpush1.msra.mxu0 0.0
        %359 = vmatprep.subr.mxu0 0.0
        %360 = vmatpush1.msra.mxu0 0.0
        %361 = vmatprep.subr.mxu0 0.0
        %362 = vmatpush1.msra.mxu0 0.0
        %363 = vmatprep.subr.mxu0 0.0
        %364 = vmatpush1.msra.mxu0 0.0
        %365 = vmatprep.subr.mxu0 0.0
        %366 = vmatpush1.msra.mxu0 0.0
        %367 = vmatprep.mubr.f32.mxu0 0.0
        %368 = vmatmul.mubr.f32.gmra.mrb[0].mxu0 %v270
        %v369 = vpop.f32.mrb[0].mxu0
        %v370 = vadd.f32 0.0, %v369
        %v371 = vpop.f32.mrb[0].mxu0
        %v372 = vadd.f32 0.0, %v371
        %373 = vdwg.mxu0
        %v376 = vcombine.low %v370, %v372
        %v378 = vunpack.c.l.s4 1966171168
        %v379 = vunpack.c.0.s8 %v378
        %v380 = vlaneseq
        %v381 = vshrl.u32 %v380, 7
        %v382 = vsub.s32 %v379, %v381
        %v383 = vrot.slane %v376, %v382
        %v385 = vunpack.c.l.s4 1966171168
        %v386 = vunpack.c.0.s8 %v385
        %v387 = vlaneseq
        %v388 = vshrl.u32 %v387, 7
        %v389 = vsub.s32 %v386, %v388
        %v390 = vrot.slane %v383, %v389
        %v392 = vadd.f32 %v269, %v390
        %v393 = vld [vmem:[%s3] sm:$0x3]
        %v394 = vadd.f32 %v392, %v393
        %395 = vst [vmem:[#allocation10] sm:$0x1] %v394
        %v397 = vlaneseq
        %v398 = vshrl.u32 %v397, 7
        %v399 = vsub.s32 1, %v398
        %v400 = vrot.slane %v394, %v399
        %vm402 = vcmask 1040384
        %v403 = vsel %vm402, %v400, -inf
        %404 = vmax.xlane.f32.xlu0 %v403
        %v405 = vpop.xlane.xlu0 %404
        %v406 = vrot.slane %v394, 1
        %v408 = vsub.f32 %v406, %v405
        %v409 = vmul.f32 %v408, 1.442695
        %v410 = vpow.pop %v409
        %v411 = vsel %vm402, %v410, 0.0
        %412 = vadd.xlane.f32.xlu0 %v411
        %v413 = vpop.xlane.xlu0 %412
        %v414 = vlog2.pop %v413
        %v415 = vmul.f32 %v414, 0.6931472
        %v416 = vsub.f32 %v408, %v415
        %417 = vst [vmem:[%s259] sm:$0x1] %v416
        %s418 = sand.u32 %s129, 1
        %s419 = scalar_lea.sflag [#allocation6], %s418
        %s420 = sand.u32 %s129, 1
        %s421 = scalar_lea.vmem [#allocation9], %s420
        // Predicated region
        $region49: #{tpu_custom_call.1} parent=35 // pred_check
          %p422 = pneg %p139
        $region50: #{tpu_custom_call.1} parent=35 // pred_check_branch
          %424 = sbr.rel (%p422) target = $region52
        $region51: #{tpu_custom_call.1} parent=35 // pred_region
          %s426 = ssub.s32 16, 16
          %427 = vsyncadd %s419, %s426
          %s428 = smul.addr %s30, 16
          %s429 = scalar_lea.hbm %s5, %s428
          %s431 = sshll.u32 %s421, 4
          %s432 = int_to_ptr.vmem [resolvable:$true] %s431
          %434 = dma.vmem_to_hbm [thread:$0]  %s432, 16, %s429, %s419
        $region52: #{tpu_custom_call.1} parent=35 // pred_fallthru
          _
        // Predicated region
        $region53: #{tpu_custom_call.1} parent=35 // pred_check
          %p435 = pneg %p160
        $region54: #{tpu_custom_call.1} parent=35 // pred_check_branch
          %437 = sbr.rel (%p435) target = $region56
        $region55: #{tpu_custom_call.1} parent=35 // pred_region
          %s439 = ssub.s32 16, 16
          %440 = vsyncadd [#allocation11], %s439
          %s442 = sshll.u32 [#allocation10], 4
          %s443 = int_to_ptr.vmem [resolvable:$true] %s442
          %445 = dma.vmem_to_hbm [thread:$0]  %s443, 16, %s6, [#allocation11]
        $region56: #{tpu_custom_call.1} parent=35 // pred_fallthru
          _
        // Predicated region
        $region57: #{tpu_custom_call.1} parent=35 // pred_check
          %p446 = pneg %p160
        $region58: #{tpu_custom_call.1} parent=35 // pred_check_branch
          %448 = sbr.rel (%p446) target = $region60
        $region59: #{tpu_custom_call.1} parent=35 // pred_region
          %449 = dma.done [#allocation11], 16
        $region60: #{tpu_custom_call.1} parent=35 // pred_fallthru
          _
      $region36: #{tpu_custom_call.1} parent=5 // pred_fallthru
        _
      %p450 = scmp.le.s32.totalorder 2, %s25
      // Predicated region
      $region61: #{tpu_custom_call.1} parent=5 // pred_check
        %p451 = pneg %p450
      $region62: #{tpu_custom_call.1} parent=5 // pred_check_branch
        %453 = sbr.rel (%p451) target = $region64
      $region63: #{tpu_custom_call.1} parent=5 // pred_region
        %s454 = ssub.s32 %s25, 2
        // Predicated region
        $region65: #{tpu_custom_call.1} parent=63 // pred_check
          %p455 = pneg %p145
        $region66: #{tpu_custom_call.1} parent=63 // pred_check_branch
          %457 = sbr.rel (%p455) target = $region68
        $region67: #{tpu_custom_call.1} parent=63 // pred_region
          %s458 = sand.u32 %s130, 1
          %s459 = scalar_lea.sflag [#allocation6], %s458
          %s460 = sand.u32 %s130, 1
          %s461 = scalar_lea.vmem [#allocation9], %s460
          %462 = dma.done %s459, 16
        $region68: #{tpu_custom_call.1} parent=63 // pred_fallthru
          _
      $region64: #{tpu_custom_call.1} parent=5 // pred_fallthru
        _
    $region6: #{tpu_custom_call.1} parent=1 // loop_footer
      %s29 = sadd.s32 1, %s25
    $region7: #{tpu_custom_call.1} parent=1 // loop_footer_branch
      %24 = sbr.rel target = $region3
    $region8: #{tpu_custom_call.1} parent=1 // loop_exit
      _
    %463 = vsyncpa [#allocation5], 1
    %s464 = scalar_lea.sflag [#allocation5], 1
    %465 = vsyncpa %s464, 1
    %466 = vsyncpa [#allocation8], 1
    %467 = vsyncpa [#allocation6], 1
    %s468 = scalar_lea.sflag [#allocation6], 1
    %469 = vsyncpa %s468, 1
    %470 = vsyncpa [#allocation11], 1

</llo_original>
